<compile_context>
chip_gen: v7x
topology: tpu7x:2x2x1
jax: 0.10.0
libtpu: 0.0.40
codegen_flags: <defaults>
</compile_context>

<pallas_src>
import functools

import jax
import jax.numpy as jnp
from jax import lax
from jax.experimental import pallas as pl
from jax.experimental.pallas import tpu as pltpu


def _round_up(x, m):
    return ((x + m - 1) // m) * m


def _pick_tile(dim, desired, granule):
    """Pad `dim` to a hardware-friendly size and pick a tile that divides it."""
    padded = _round_up(dim, granule)
    if padded >= desired:
        tile = desired
        padded = _round_up(padded, tile)
    else:
        tile = padded
    return padded, tile


def _sparse_linear_kernel(x_ref, w_ref, m_ref, b_ref, o_ref, acc_ref):
    k = pl.program_id(2)

    @pl.when(k == 0)
    def _init():
        acc_ref[...] = jnp.zeros_like(acc_ref)

    # Mask application on the VPU (f32 multiply -> robust on v5e, hidden under the
    # MXU), then MXU matmul contracting the IN axis of both operands directly:
    # no `.T` / XLU transpose of the (tn, tk) weight tile.
    w_masked = (
        w_ref[...].astype(jnp.float32) * m_ref[...].astype(jnp.float32)
    ).astype(x_ref.dtype)                                        # (tn, tk) bf16

    acc_ref[...] += lax.dot_general(
        x_ref[...], w_masked,
        dimension_numbers=(((1,), (1,)), ((), ())),              # contract IN with IN
        preferred_element_type=jnp.float32,
    )                                                            # (tm, tn) f32

    @pl.when(k == pl.num_programs(2) - 1)
    def _finalize():
        # Bias is added exactly once, in the K epilogue.
        o_ref[...] = (acc_ref[...] + b_ref[...]).astype(o_ref.dtype)


@functools.partial(jax.jit, static_argnames=("tm", "tn", "tk"))
def sparse_linear(x, weight, mask, bias, *, tm=256, tn=256, tk=512):
    """y = x @ (weight * mask).T + bias.

    x: (B, IN) f32; weight: (OUT, IN) f32; mask: (OUT, IN) bool/float;
    bias: (OUT,) f32  ->  (B, OUT) f32.
    """
    B, IN = x.shape
    OUT, _ = weight.shape

    # Pad to MXU / lane-friendly sizes and pick tiles that divide them.
    M, bm = _pick_tile(B, tm, 8)       # batch tile (sublane granularity)
    N, bn = _pick_tile(OUT, tn, 128)   # lane-dense output tile
    K, bk = _pick_tile(IN, tk, 128)    # contraction tile

    # Operand prep (cheap XLA ops; in a real model the weight/mask/bias prep would
    # be hoisted and done once).  x/weight as bf16, mask as int8, bias as f32.
    x_p = jnp.zeros((M, K), jnp.bfloat16).at[:B, :IN].set(x.astype(jnp.bfloat16))
    w_p = jnp.zeros((N, K), jnp.bfloat16).at[:OUT, :IN].set(
        weight.astype(jnp.bfloat16))
    m_p = jnp.zeros((N, K), jnp.int8).at[:OUT, :IN].set(mask.astype(jnp.int8))
    b_p = jnp.zeros((1, N), jnp.float32).at[0, :OUT].set(bias.astype(jnp.float32))

    grid = (M // bm, N // bn, K // bk)

    cost = pl.CostEstimate(
        flops=2 * M * N * K,
        transcendentals=0,
        bytes_accessed=(x_p.size * 2 + w_p.size * 2 + m_p.size * 1
                        + b_p.size * 4 + M * N * 4),
    )

    out = pl.pallas_call(
        _sparse_linear_kernel,
        out_shape=jax.ShapeDtypeStruct((M, N), jnp.float32),
        grid=grid,
        in_specs=[
            pl.BlockSpec((bm, bk), lambda i, j, k: (i, k)),   # x
            pl.BlockSpec((bn, bk), lambda i, j, k: (j, k)),   # weight (bf16)
            pl.BlockSpec((bn, bk), lambda i, j, k: (j, k)),   # mask (int8)
            pl.BlockSpec((1, bn), lambda i, j, k: (0, j)),    # bias
        ],
        out_specs=pl.BlockSpec((bm, bn), lambda i, j, k: (i, j)),
        scratch_shapes=[pltpu.VMEM((bm, bn), jnp.float32)],
        compiler_params=pltpu.CompilerParams(
            dimension_semantics=("parallel", "parallel", "arbitrary"),
        ),
        cost_estimate=cost,
    )(x_p, w_p, m_p, b_p)

    return out[:B, :OUT]


def init_sparse_linear_params(key, in_features, out_features, sparsity):
    """Deterministic parameter init mirroring SparseLinear.__init__."""
    k_w, k_perm = jax.random.split(key)
    weight = 0.01 * jax.random.normal(
        k_w, (out_features, in_features), dtype=jnp.float32
    )
    bias = jnp.zeros((out_features,), dtype=jnp.float32)

    total = in_features * out_features
    k_keep = int((1.0 - sparsity) * total)
    flat_mask = jnp.zeros((total,), dtype=jnp.bool_).at[:k_keep].set(True)
    flat_mask = jax.random.permutation(k_perm, flat_mask)
    mask = flat_mask.reshape(out_features, in_features)
    return weight, bias, mask


if __name__ == "__main__":
    key = jax.random.PRNGKey(0)
    k_params, k_x = jax.random.split(key)

    batch = 8
    in_features = 32
    out_features = 64
    sparsity = 0.5

    weight, bias, mask = init_sparse_linear_params(
        k_params, in_features, out_features, sparsity
    )
    x = jax.random.normal(k_x, (batch, in_features), dtype=jnp.float32)

    y = sparse_linear(x, weight, mask, bias)
    y = jax.block_until_ready(y)

    # Reference with the same bf16 operand quantization (f32 accumulate), matching
    # what the kernel computes; semantics identical to F.linear(x, weight*mask, bias).
    x_q = x.astype(jnp.bfloat16).astype(jnp.float32)
    w_q = (weight * mask.astype(jnp.float32)).astype(jnp.bfloat16).astype(jnp.float32)
    y_ref = x_q @ w_q.T + bias

    assert y.shape == (batch, out_features)
    err = float(jnp.max(jnp.abs(y - y_ref)))
    assert jnp.allclose(y, y_ref, atol=1e-4, rtol=1e-4), err

    print("KERNEL_OK")
</pallas_src>

<mosaic_0001>
module attributes {stable_mosaic.version = 11 : i64} {
  func.func @_sparse_linear_kernel(%arg0: i32, %arg1: i32, %arg2: i32, %arg3: memref<8x128xbf16, #tpu.memory_space<vmem>>, %arg4: memref<128x128xbf16, #tpu.memory_space<vmem>>, %arg5: memref<128x128xi8, #tpu.memory_space<vmem>>, %arg6: memref<1x128xf32, #tpu.memory_space<vmem>>, %arg7: memref<8x128xf32, #tpu.memory_space<vmem>>, %arg8: memref<8x128xf32, #tpu.memory_space<vmem>>) attributes {dimension_semantics = [#tpu.dimension_semantics<parallel>, #tpu.dimension_semantics<parallel>, #tpu.dimension_semantics<arbitrary>], iteration_bounds = array<i64: 1, 1, 1>, scalar_prefetch = 0 : i64, scratch_operands = 1 : i64, tpu.core_type = #tpu.core_type<tc>, window_params = [{transform_indices = @transform_0, window_bounds = array<i64: 8, 128>}, {transform_indices = @transform_1, window_bounds = array<i64: 128, 128>}, {transform_indices = @transform_2, window_bounds = array<i64: 128, 128>}, {transform_indices = @transform_3, window_bounds = array<i64: 1, 128>}, {transform_indices = @transform_4, window_bounds = array<i64: 8, 128>}]} {
    %c0_i32 = arith.constant 0 : i32
    %0 = arith.cmpi eq, %arg2, %c0_i32 : i32
    %1 = arith.extui %0 : i1 to i32
    %c0_i32_0 = arith.constant 0 : i32
    %2 = arith.cmpi ne, %1, %c0_i32_0 : i32
    scf.if %2 {
      %cst_12 = arith.constant 0.000000e+00 : f32
      %17 = vector.broadcast %cst_12 : f32 to vector<8x128xf32>
      %c0_13 = arith.constant 0 : index
      %c0_14 = arith.constant 0 : index
      %18 = vector.load %arg8[%c0_13, %c0_14] : memref<8x128xf32, #tpu.memory_space<vmem>>, vector<8x128xf32>
      tpu.vector_store %arg8[%c0_13, %c0_14], %17 {strides = array<i32>} : memref<8x128xf32, #tpu.memory_space<vmem>>, vector<8x128xf32>,
    } else {
    }
    %c0 = arith.constant 0 : index
    %c0_1 = arith.constant 0 : index
    %3 = vector.load %arg4[%c0, %c0_1] : memref<128x128xbf16, #tpu.memory_space<vmem>>, vector<128x128xbf16>
    %4 = arith.extf %3 : vector<128x128xbf16> to vector<128x128xf32>
    %c0_2 = arith.constant 0 : index
    %c0_3 = arith.constant 0 : index
    %5 = vector.load %arg5[%c0_2, %c0_3] : memref<128x128xi8, #tpu.memory_space<vmem>>, vector<128x128xi8>
    %6 = arith.sitofp %5 : vector<128x128xi8> to vector<128x128xf32>
    %7 = arith.mulf %4, %6 : vector<128x128xf32>
    %8 = arith.truncf %7 : vector<128x128xf32> to vector<128x128xbf16>
    %c0_4 = arith.constant 0 : index
    %c0_5 = arith.constant 0 : index
    %9 = vector.load %arg8[%c0_4, %c0_5] : memref<8x128xf32, #tpu.memory_space<vmem>>, vector<8x128xf32>
    %c0_6 = arith.constant 0 : index
    %c0_7 = arith.constant 0 : index
    %10 = vector.load %arg3[%c0_6, %c0_7] : memref<8x128xbf16, #tpu.memory_space<vmem>>, vector<8x128xbf16>
    %cst = arith.constant dense<0.000000e+00> : vector<8x128xf32>
    %11 = tpu.matmul %10, %8, %cst {dimension_numbers = #tpu.dot_dimension_numbers<[1], [1], [0], [0], [0, 0, 1, 0], [], []>} : vector<8x128xbf16>, vector<128x128xbf16>, vector<8x128xf32> -> vector<8x128xf32>
    %12 = arith.addf %9, %11 : vector<8x128xf32>
    %c0_8 = arith.constant 0 : index
    %c0_9 = arith.constant 0 : index
    %13 = vector.load %arg8[%c0_8, %c0_9] : memref<8x128xf32, #tpu.memory_space<vmem>>, vector<8x128xf32>
    tpu.vector_store %arg8[%c0_8, %c0_9], %12 {strides = array<i32>} : memref<8x128xf32, #tpu.memory_space<vmem>>, vector<8x128xf32>,
    %c0_i32_10 = arith.constant 0 : i32
    %14 = arith.cmpi eq, %arg2, %c0_i32_10 : i32
    %15 = arith.extui %14 : i1 to i32
    %c0_i32_11 = arith.constant 0 : i32
    %16 = arith.cmpi ne, %15, %c0_i32_11 : i32
    scf.if %16 {
      %c0_12 = arith.constant 0 : index
      %c0_13 = arith.constant 0 : index
      %17 = vector.load %arg8[%c0_12, %c0_13] : memref<8x128xf32, #tpu.memory_space<vmem>>, vector<8x128xf32>
      %c0_14 = arith.constant 0 : index
      %c0_15 = arith.constant 0 : index
      %18 = vector.load %arg6[%c0_14, %c0_15] : memref<1x128xf32, #tpu.memory_space<vmem>>, vector<1x128xf32>
      %19 = vector.broadcast %18 : vector<1x128xf32> to vector<8x128xf32>
      %20 = arith.addf %17, %19 : vector<8x128xf32>
      %c0_16 = arith.constant 0 : index
      %c0_17 = arith.constant 0 : index
      %21 = vector.load %arg7[%c0_16, %c0_17] : memref<8x128xf32, #tpu.memory_space<vmem>>, vector<8x128xf32>
      tpu.vector_store %arg7[%c0_16, %c0_17], %20 {strides = array<i32>} : memref<8x128xf32, #tpu.memory_space<vmem>>, vector<8x128xf32>,
    } else {
    }
    return
  }
  func.func @transform_0(%arg0: i32, %arg1: i32, %arg2: i32) -> (i32, i32) {
    %c0_i32 = arith.constant 0 : i32
    return %arg0, %arg2 : i32, i32
  }
  func.func @transform_1(%arg0: i32, %arg1: i32, %arg2: i32) -> (i32, i32) {
    %c0_i32 = arith.constant 0 : i32
    return %arg1, %arg2 : i32, i32
  }
  func.func @transform_2(%arg0: i32, %arg1: i32, %arg2: i32) -> (i32, i32) {
    %c0_i32 = arith.constant 0 : i32
    return %arg1, %arg2 : i32, i32
  }
  func.func @transform_3(%arg0: i32, %arg1: i32, %arg2: i32) -> (i32, i32) {
    %c0_i32 = arith.constant 0 : i32
    %c0_i32_0 = arith.constant 0 : i32
    return %c0_i32, %arg1 : i32, i32
  }
  func.func @transform_4(%arg0: i32, %arg1: i32, %arg2: i32) -> (i32, i32) {
    %c0_i32 = arith.constant 0 : i32
    return %arg0, %arg1 : i32, i32
  }
}

</mosaic_0001>

<llo_original>
// kernel: sparse_linear.1
$region0: #{sparse_linear.1}
  #allocation0 [shape = 'u32[]', space=smem, size = 0x4, offset = 0x4, fixed_abs, tag = 'smem constant byte address 0x4 - core index']
  #allocation1 [shape = 'u32[144,128]{1,0:T(1,128)}', space=vmem, size = 0x12000, scoped, tag = 'internal scratch']
  #allocation2 [shape = 'f32[8,128]{1,0:T(8,128)}', space=vmem, size = 0x1000, scoped, tag = 'scratch operand']
  %s0 = inlined_call_operand.vmem [shape: bf16[8,128], index: 0, kind: input, shape index: {}]
  %s1 = inlined_call_operand.vmem [shape: bf16[128,128], index: 1, kind: input, shape index: {}]
  %s2 = inlined_call_operand.vmem [shape: s8[128,128], index: 2, kind: input, shape index: {}]
  %s3 = inlined_call_operand.vmem [shape: f32[1,128], index: 3, kind: input, shape index: {}]
  %s4 = inlined_call_operand.hbm [shape: f32[8,128], index: 4, kind: output, shape index: {}]
  %s5 = sld [smem:[#allocation0]]
  $region34: #{sparse_linear.1} parent=0
    _
  %s7 = ssub.s32 1, %s5
  %s8 = scalar_select 0, %s7, %s5
  $region1: #{sparse_linear.1} parent=0
    #allocation3 [shape = 'u8[4096]{0}', space=vmem, size = 0x1000, scoped, tag = 'output window, operand 0, single buffered']
    #allocation4 [shape = 's32[1]{0}', space=sflag, size = 0x4, scoped, tag = 'scoped memory for sparse_linear.1']
    %9 = vsyncpa [#allocation4], 0
    // Predicated region
    $region2: #{sparse_linear.1} parent=1 // pred_check
      _
    $region3: #{sparse_linear.1} parent=1 // pred_check_branch
      %11 = sbr.rel (0) target = $region5
    $region4: #{sparse_linear.1} parent=1 // pred_region
      _
    $region5: #{sparse_linear.1} parent=1 // pred_fallthru
      _
    // Predicated region
    $region6: #{sparse_linear.1} parent=1 // pred_check
      _
    $region7: #{sparse_linear.1} parent=1 // pred_check_branch
      %13 = sbr.rel (0) target = $region9
    $region8: #{sparse_linear.1} parent=1 // pred_region
      _
    $region9: #{sparse_linear.1} parent=1 // pred_fallthru
      _
    // Predicated region
    $region10: #{sparse_linear.1} parent=1 // pred_check
      _
    $region11: #{sparse_linear.1} parent=1 // pred_check_branch
      %15 = sbr.rel (0) target = $region13
    $region12: #{sparse_linear.1} parent=1 // pred_region
      _
    $region13: #{sparse_linear.1} parent=1 // pred_fallthru
      _
    // Predicated region
    $region14: #{sparse_linear.1} parent=1 // pred_check
      _
    $region15: #{sparse_linear.1} parent=1 // pred_check_branch
      %17 = sbr.rel (0) target = $region17
    $region16: #{sparse_linear.1} parent=1 // pred_region
      _
    $region17: #{sparse_linear.1} parent=1 // pred_fallthru
      _
    %p19 = scmp.eq.s32.totalorder 0, 0
    // Predicated region
    $region18: #{sparse_linear.1} parent=1 // pred_check
      %p20 = pneg %p19
    $region19: #{sparse_linear.1} parent=1 // pred_check_branch
      %22 = sbr.rel (%p20) target = $region21
    $region20: #{sparse_linear.1} parent=1 // pred_region
      %23 = vst [vmem:[#allocation2] sm:$0xff] 0.0
    $region21: #{sparse_linear.1} parent=1 // pred_fallthru
      _
    %v24 = vld [vmem:[%s1] sm:$0xf]
    %v25 = vld [vmem:[%s1 + $0x4] sm:$0xf]
    %v26 = vld [vmem:[%s1 + $0x8] sm:$0xf]
    %v27 = vld [vmem:[%s1 + $0xc] sm:$0xf]
    %v28 = vld [vmem:[%s1 + $0x10] sm:$0xf]
    %v29 = vld [vmem:[%s1 + $0x14] sm:$0xf]
    %v30 = vld [vmem:[%s1 + $0x18] sm:$0xf]
    %v31 = vld [vmem:[%s1 + $0x1c] sm:$0xf]
    %v32 = vld [vmem:[%s1 + $0x20] sm:$0xf]
    %v33 = vld [vmem:[%s1 + $0x24] sm:$0xf]
    %v34 = vld [vmem:[%s1 + $0x28] sm:$0xf]
    %v35 = vld [vmem:[%s1 + $0x2c] sm:$0xf]
    %v36 = vld [vmem:[%s1 + $0x30] sm:$0xf]
    %v37 = vld [vmem:[%s1 + $0x34] sm:$0xf]
    %v38 = vld [vmem:[%s1 + $0x38] sm:$0xf]
    %v39 = vld [vmem:[%s1 + $0x3c] sm:$0xf]
    %v40 = vunpack.c.l.bf16 %v24
    %v41 = vunpack.c.l.bf16 %v25
    %v42 = vunpack.c.l.bf16 %v26
    %v43 = vunpack.c.l.bf16 %v27
    %v44 = vunpack.c.l.bf16 %v28
    %v45 = vunpack.c.l.bf16 %v29
    %v46 = vunpack.c.l.bf16 %v30
    %v47 = vunpack.c.l.bf16 %v31
    %v48 = vunpack.c.l.bf16 %v32
    %v49 = vunpack.c.l.bf16 %v33
    %v50 = vunpack.c.l.bf16 %v34
    %v51 = vunpack.c.l.bf16 %v35
    %v52 = vunpack.c.l.bf16 %v36
    %v53 = vunpack.c.l.bf16 %v37
    %v54 = vunpack.c.l.bf16 %v38
    %v55 = vunpack.c.l.bf16 %v39
    %v56 = vld [vmem:[%s2] sm:$0xff]
    %v57 = vld [vmem:[%s2 + $0x8] sm:$0xff]
    %v58 = vld [vmem:[%s2 + $0x10] sm:$0xff]
    %v59 = vld [vmem:[%s2 + $0x18] sm:$0xff]
    %v60 = vunpack.c.0.s8 %v56
    %v61 = vunpack.c.1.s8 %v56
    %v62 = vunpack.c.2.s8 %v56
    %v63 = vunpack.c.3.s8 %v56
    %v64 = vunpack.c.0.s8 %v57
    %v65 = vunpack.c.1.s8 %v57
    %v66 = vunpack.c.2.s8 %v57
    %v67 = vunpack.c.3.s8 %v57
    %v68 = vunpack.c.0.s8 %v58
    %v69 = vunpack.c.1.s8 %v58
    %v70 = vunpack.c.2.s8 %v58
    %v71 = vunpack.c.3.s8 %v58
    %v72 = vunpack.c.0.s8 %v59
    %v73 = vunpack.c.1.s8 %v59
    %v74 = vunpack.c.2.s8 %v59
    %v75 = vunpack.c.3.s8 %v59
    %v76 = vcvt.s32.f32 %v60
    %v77 = vcvt.s32.f32 %v61
    %v78 = vcvt.s32.f32 %v62
    %v79 = vcvt.s32.f32 %v63
    %v80 = vcvt.s32.f32 %v64
    %v81 = vcvt.s32.f32 %v65
    %v82 = vcvt.s32.f32 %v66
    %v83 = vcvt.s32.f32 %v67
    %v84 = vcvt.s32.f32 %v68
    %v85 = vcvt.s32.f32 %v69
    %v86 = vcvt.s32.f32 %v70
    %v87 = vcvt.s32.f32 %v71
    %v88 = vcvt.s32.f32 %v72
    %v89 = vcvt.s32.f32 %v73
    %v90 = vcvt.s32.f32 %v74
    %v91 = vcvt.s32.f32 %v75
    %v92 = vmul.f32 %v40, %v76
    %v93 = vmul.f32 %v41, %v77
    %v94 = vmul.f32 %v42, %v78
    %v95 = vmul.f32 %v43, %v79
    %v96 = vmul.f32 %v44, %v80
    %v97 = vmul.f32 %v45, %v81
    %v98 = vmul.f32 %v46, %v82
    %v99 = vmul.f32 %v47, %v83
    %v100 = vmul.f32 %v48, %v84
    %v101 = vmul.f32 %v49, %v85
    %v102 = vmul.f32 %v50, %v86
    %v103 = vmul.f32 %v51, %v87
    %v104 = vmul.f32 %v52, %v88
    %v105 = vmul.f32 %v53, %v89
    %v106 = vmul.f32 %v54, %v90
    %v107 = vmul.f32 %v55, %v91
    %v108 = vpack.c.bf16 %v93, %v92
    %v109 = vpack.c.bf16 %v95, %v94
    %v110 = vpack.c.bf16 %v97, %v96
    %v111 = vpack.c.bf16 %v99, %v98
    %v112 = vpack.c.bf16 %v101, %v100
    %v113 = vpack.c.bf16 %v103, %v102
    %v114 = vpack.c.bf16 %v105, %v104
    %v115 = vpack.c.bf16 %v107, %v106
    %v116 = vld [vmem:[#allocation2] sm:$0xff]
    %v117 = vld [vmem:[%s0] sm:$0xf]
    %118 = vmatprep.subr.bf16.mxu0 0
    %119 = vmatpush1.bf16.xpose.msra.mxu0 %v108
    %120 = vmatprep.subr.bf16.mxu0 0
    %121 = vmatpush1.bf16.xpose.msra.mxu0 %v109
    %122 = vmatprep.subr.bf16.mxu0 0
    %123 = vmatpush1.bf16.xpose.msra.mxu0 %v110
    %124 = vmatprep.subr.bf16.mxu0 0
    %125 = vmatpush1.bf16.xpose.msra.mxu0 %v111
    %126 = vmatprep.subr.bf16.mxu0 0
    %127 = vmatpush1.bf16.xpose.msra.mxu0 %v112
    %128 = vmatprep.subr.bf16.mxu0 0
    %129 = vmatpush1.bf16.xpose.msra.mxu0 %v113
    %130 = vmatprep.subr.bf16.mxu0 0
    %131 = vmatpush1.bf16.xpose.msra.mxu0 %v114
    %132 = vmatprep.subr.bf16.mxu0 0
    %133 = vmatpush1.bf16.xpose.msra.mxu0 %v115
    %134 = vmatprep.subr.bf16.mxu0 0
    %135 = vmatpush1.bf16.xpose.msra.mxu0 0
    %136 = vmatprep.subr.bf16.mxu0 0
    %137 = vmatpush1.bf16.xpose.msra.mxu0 0
    %138 = vmatprep.subr.bf16.mxu0 0
    %139 = vmatpush1.bf16.xpose.msra.mxu0 0
    %140 = vmatprep.subr.bf16.mxu0 0
    %141 = vmatpush1.bf16.xpose.msra.mxu0 0
    %142 = vmatprep.subr.bf16.mxu0 0
    %143 = vmatpush1.bf16.xpose.msra.mxu0 0
    %144 = vmatprep.subr.bf16.mxu0 0
    %145 = vmatpush1.bf16.xpose.msra.mxu0 0
    %146 = vmatprep.subr.bf16.mxu0 0
    %147 = vmatpush1.bf16.xpose.msra.mxu0 0
    %148 = vmatprep.subr.bf16.mxu0 0
    %149 = vmatpush1.bf16.xpose.msra.mxu0 0
    %150 = vmatprep.mubr.bf16.mxu0 0
    %151 = vmatmul.mubr.bf16.gmra.mrb[0].mxu0 %v117
    %v152 = vpop.f32.mrb[0].mxu0
    %v153 = vadd.f32 0.0, %v152
    %v154 = vpop.f32.mrb[0].mxu0
    %v155 = vpop.f32.mrb[0].mxu0
    %v156 = vpop.f32.mrb[0].mxu0
    %157 = vdwg.mxu0
    %v158 = vadd.f32 %v116, %v153
    %159 = vst [vmem:[#allocation2] sm:$0xff] %v158
    // Predicated region
    $region22: #{sparse_linear.1} parent=1 // pred_check
      %p160 = pneg %p19
    $region23: #{sparse_linear.1} parent=1 // pred_check_branch
      %162 = sbr.rel (%p160) target = $region25
    $region24: #{sparse_linear.1} parent=1 // pred_region
      %v163 = vld [vmem:[#allocation2] sm:$0xff]
      %v164 = vld [vmem:[%s3] sm:$0x1]
      %v166 = vlaneseq
      %v167 = vshrl.u32 %v166, 7
      %v168 = vsub.s32 0, %v167
      %v169 = vrot.slane %v164, %v168
      %v171 = vadd.f32 %v163, %v169
      %172 = vst [vmem:[#allocation3] sm:$0xff] %v171
    $region25: #{sparse_linear.1} parent=1 // pred_fallthru
      _
    // Predicated region
    $region26: #{sparse_linear.1} parent=1 // pred_check
      _
    $region27: #{sparse_linear.1} parent=1 // pred_check_branch
      %174 = sbr.rel (0) target = $region29
    $region28: #{sparse_linear.1} parent=1 // pred_region
      %s176 = ssub.s32 128, 128
      %177 = vsyncadd [#allocation4], %s176
      %s179 = sshll.u32 [#allocation3], 4
      %s180 = int_to_ptr.vmem [resolvable:$true] %s179
      %182 = dma.vmem_to_hbm [thread:$0]  %s180, 128, %s4, [#allocation4]
    $region29: #{sparse_linear.1} parent=1 // pred_fallthru
      _
    // Predicated region
    $region30: #{sparse_linear.1} parent=1 // pred_check
      _
    $region31: #{sparse_linear.1} parent=1 // pred_check_branch
      %184 = sbr.rel (0) target = $region33
    $region32: #{sparse_linear.1} parent=1 // pred_region
      %185 = dma.done [#allocation4], 128
    $region33: #{sparse_linear.1} parent=1 // pred_fallthru
      _
    %186 = vsyncpa [#allocation4], 1

</llo_original>
